<compile_context>
chip_gen: v7x
topology: tpu7x:2x2x1
jax: 0.10.0
libtpu: 0.0.40
codegen_flags: <defaults>
</compile_context>

<pallas_src>
import jax
import jax.numpy as jnp
from jax.experimental import pallas as pl
from jax.experimental.pallas import tpu as pltpu

BN_EPS = 1e-5
K = 4  # DCGAN_G kernel size (fixed by the module)


def _round_up(x, m):
    return ((x + m - 1) // m) * m


def _choose_tile_m(m, max_tile):
    """Largest row-tile that divides M, is a multiple of 8 and <= max_tile."""
    if m <= max_tile:
        return m
    t = max_tile - (max_tile % 8)
    while t >= 8:
        if m % t == 0:
            return t
        t -= 8
    return m


# ----------------------------- Pallas kernels ------------------------------ #

def _matmul_stats_kernel(a_ref, w_ref, y_ref, s_ref):
    """One M-tile of Y = A @ W plus per-column sum / sum-of-squares.

    a: (TM, Kc) bf16    w: (Kc, Nc) bf16 (VMEM-resident across the grid)
    y: (TM, Nc) bf16    s: (1, 2, Nc) f32  (row 0 = sum, row 1 = sum of squares)
    """
    acc = jnp.dot(a_ref[...], w_ref[...], preferred_element_type=jnp.float32)
    y_ref[...] = acc.astype(y_ref.dtype)
    s_ref[:, 0:1, :] = jnp.sum(acc, axis=0, keepdims=True)[None]
    s_ref[:, 1:2, :] = jnp.sum(acc * acc, axis=0, keepdims=True)[None]


def _matmul_hardtanh_kernel(a_ref, w_ref, y_ref):
    acc = jnp.dot(a_ref[...], w_ref[...], preferred_element_type=jnp.float32)
    y_ref[...] = jnp.clip(acc, -1.0, 1.0).astype(y_ref.dtype)


def _bn_relu_kernel(y_ref, scale_ref, shift_ref, o_ref):
    y = y_ref[...].astype(jnp.float32)
    o = y * scale_ref[...] + shift_ref[...]
    o_ref[...] = jnp.maximum(o, 0.0).astype(o_ref.dtype)


# --------------------------- Tiled pallas wrappers -------------------------- #

def _tiled_matmul_stats(a_bf16, w_bf16, max_tile_m):
    m, kc = a_bf16.shape
    nc = w_bf16.shape[1]
    tm = _choose_tile_m(m, max_tile_m)
    nt = m // tm
    flops = 2 * m * kc * nc
    bytes_accessed = 2 * a_bf16.size + 2 * w_bf16.size + 2 * m * nc + 4 * nt * 2 * nc
    y, stats = pl.pallas_call(
        _matmul_stats_kernel,
        out_shape=(jax.ShapeDtypeStruct((m, nc), jnp.bfloat16),
                   jax.ShapeDtypeStruct((nt, 2, nc), jnp.float32)),
        grid=(nt,),
        in_specs=[pl.BlockSpec((tm, kc), lambda i: (i, 0)),
                  pl.BlockSpec((kc, nc), lambda i: (0, 0))],
        out_specs=(pl.BlockSpec((tm, nc), lambda i: (i, 0)),
                   pl.BlockSpec((1, 2, nc), lambda i: (i, 0, 0))),
        compiler_params=pltpu.CompilerParams(dimension_semantics=("parallel",)),
        cost_estimate=pl.CostEstimate(flops=flops, transcendentals=0,
                                      bytes_accessed=bytes_accessed),
    )(a_bf16, w_bf16)
    return y, stats


def _tiled_matmul_hardtanh(a_bf16, w_bf16, max_tile_m):
    m, kc = a_bf16.shape
    nc = w_bf16.shape[1]
    tm = _choose_tile_m(m, max_tile_m)
    nt = m // tm
    flops = 2 * m * kc * nc
    bytes_accessed = 2 * a_bf16.size + 2 * w_bf16.size + 4 * m * nc
    return pl.pallas_call(
        _matmul_hardtanh_kernel,
        out_shape=jax.ShapeDtypeStruct((m, nc), jnp.float32),
        grid=(nt,),
        in_specs=[pl.BlockSpec((tm, kc), lambda i: (i, 0)),
                  pl.BlockSpec((kc, nc), lambda i: (0, 0))],
        out_specs=pl.BlockSpec((tm, nc), lambda i: (i, 0)),
        compiler_params=pltpu.CompilerParams(dimension_semantics=("parallel",)),
        cost_estimate=pl.CostEstimate(flops=flops, transcendentals=0,
                                      bytes_accessed=bytes_accessed),
    )(a_bf16, w_bf16)


def _tiled_bn_relu(y_bf16, scale_row, shift_row, max_tile_m):
    m, nc = y_bf16.shape
    tm = _choose_tile_m(m, max_tile_m)
    nt = m // tm
    return pl.pallas_call(
        _bn_relu_kernel,
        out_shape=jax.ShapeDtypeStruct((m, nc), jnp.bfloat16),
        grid=(nt,),
        in_specs=[pl.BlockSpec((tm, nc), lambda i: (i, 0)),
                  pl.BlockSpec((1, nc), lambda i: (0, 0)),
                  pl.BlockSpec((1, nc), lambda i: (0, 0))],
        out_specs=pl.BlockSpec((tm, nc), lambda i: (i, 0)),
        compiler_params=pltpu.CompilerParams(dimension_semantics=("parallel",)),
    )(y_bf16, scale_row, shift_row)


# ------------------------- Weight / data repacking -------------------------- #

def _prep_weight_first(w, cpad):
    """(Cin, Cout, 4, 4) -> (Cin, 16*cpad), columns ordered ((kh*4+kw)*cpad + co)."""
    cin, cout = w.shape[0], w.shape[1]
    wt = jnp.transpose(w, (0, 2, 3, 1))                      # (Cin, K, K, Cout)
    wt = jnp.pad(wt, ((0, 0), (0, 0), (0, 0), (0, cpad - cout)))
    return wt.reshape(cin, K * K * cpad)


def _prep_weight_s2(w, cpad):
    """Polyphase weight for stride-2 / pad-1 / k=4 ConvTranspose2d.

    (Cin, Cout, 4, 4) -> (9*Cin, 4*cpad); rows ordered (a, b, ci) over the 3x3
    patch, columns ordered ((r*2+s)*cpad + co) over the 2x2 output phases.
    Phase (r, s), patch tap (a, b) picks kernel tap kh = r+3-2a, kw = s+3-2b.
    """
    cin, cout = w.shape[0], w.shape[1]
    wb = jnp.zeros((3, 3, cin, 2, 2, cpad), jnp.float32)
    for a in range(3):
        for b in range(3):
            for r in range(2):
                for s in range(2):
                    kh = r + 3 - 2 * a
                    kw = s + 3 - 2 * b
                    if 0 <= kh < K and 0 <= kw < K:
                        wb = wb.at[a, b, :, r, s, :cout].set(w[:, :, kh, kw])
    return wb.reshape(9 * cin, 4 * cpad)


def _make_patches_s2(x):
    """(N, H, W, Cin) -> (N*H*W, 9*Cin) 3x3 patches of the 1-padded input."""
    n, h, w, cin = x.shape
    xp = jnp.pad(x, ((0, 0), (1, 1), (1, 1), (0, 0)))
    taps = [xp[:, a:a + h, b:b + w, :] for a in range(3) for b in range(3)]
    return jnp.concatenate(taps, axis=-1).reshape(n * h * w, 9 * cin)


def _deinterleave(y, n, h, w, cpad, cout):
    """(N*H*W, 4*cpad) phase-major -> (N, 2H, 2W, Cout)."""
    y = y.reshape(n, h, w, 2, 2, cpad)[..., :cout]
    y = jnp.transpose(y, (0, 1, 3, 2, 4, 5))
    return y.reshape(n, 2 * h, 2 * w, cout)


def _bn_scale_shift_packed(stats, gamma, beta, n_phase, cpad, cout, count):
    """Reduce per-tile stats to packed per-column BN scale / shift rows."""
    tot = jnp.sum(stats, axis=0)                                 # (2, n_phase*cpad)
    tot = jnp.sum(tot.reshape(2, n_phase, cpad)[:, :, :cout], axis=1)  # (2, cout)
    mean = tot[0] / count
    var = jnp.maximum(tot[1] / count - mean * mean, 0.0)
    scale = gamma * jax.lax.rsqrt(var + BN_EPS)
    shift = beta - mean * scale
    scale_p = jnp.zeros((n_phase, cpad), jnp.float32).at[:, :cout].set(scale)
    shift_p = jnp.zeros((n_phase, cpad), jnp.float32).at[:, :cout].set(shift)
    return scale_p.reshape(1, n_phase * cpad), shift_p.reshape(1, n_phase * cpad)


# --------------------------- Layer forward passes --------------------------- #

def _first_layer_forward(z_flat, lp, max_tile_m):
    n = z_flat.shape[0]
    cout, cpad = lp['cout'], lp['cpad']
    y, stats = _tiled_matmul_stats(z_flat, lp['wmat'], max_tile_m)
    scale, shift = _bn_scale_shift_packed(stats, lp['gamma'], lp['beta'],
                                          n_phase=K * K, cpad=cpad, cout=cout,
                                          count=float(n * K * K))
    act = _tiled_bn_relu(y, scale, shift, max_tile_m)            # (N, 16*cpad) bf16
    return act.reshape(n, K, K, cpad)[..., :cout]


def _up_layer_forward(x, lp, max_tile_m, last=False):
    n, h, w, _ = x.shape
    cout, cpad = lp['cout'], lp['cpad']
    patches = _make_patches_s2(x)                                # (N*H*W, 9*Cin) bf16
    if last:
        y = _tiled_matmul_hardtanh(patches, lp['wmat'], max_tile_m)  # f32
        return _deinterleave(y, n, h, w, cpad, cout)
    y, stats = _tiled_matmul_stats(patches, lp['wmat'], max_tile_m)
    scale, shift = _bn_scale_shift_packed(stats, lp['gamma'], lp['beta'],
                                          n_phase=4, cpad=cpad, cout=cout,
                                          count=float(n * h * w * 4))
    act = _tiled_bn_relu(y, scale, shift, max_tile_m)            # (M, 4*cpad) bf16
    return _deinterleave(act, n, h, w, cpad, cout)


# --------------------------- Model construction ----------------------------- #

def init_dcgan_g_params(key, image_size, z_size, G_h_size, n_channels):
    """Synthetic weights with the exact shapes DCGAN_G.__init__ builds,
    pre-packed (hoisted) into the matmul layouts used by the kernels."""
    mult = image_size // 8
    specs = [(z_size, G_h_size * mult, 1, 0, True)]               # first ConvT
    m = mult
    while m > 1:
        specs.append((G_h_size * m, G_h_size * (m // 2), 2, 1, True))
        m //= 2
    specs.append((G_h_size, n_channels, 2, 1, False))             # last ConvT + Hardtanh
    params = []
    for idx, (cin, cout, stride, pad, bn) in enumerate(specs):
        key, kw, kg, kb = jax.random.split(key, 4)
        w = 0.05 * jax.random.normal(kw, (cin, cout, K, K), jnp.float32)
        gamma = (1.0 + 0.1 * jax.random.normal(kg, (cout,), jnp.float32)) if bn else None
        beta = (0.1 * jax.random.normal(kb, (cout,), jnp.float32)) if bn else None
        if idx == 0:
            cpad = _round_up(cout, 8)        # packed width 16*cpad -> multiple of 128
            wmat = _prep_weight_first(w, cpad)
        else:
            cpad = _round_up(cout, 32)       # packed width 4*cpad -> multiple of 128
            wmat = _prep_weight_s2(w, cpad)
        params.append(dict(w=w, gamma=gamma, beta=beta, stride=stride, pad=pad,
                           bn=bn, cout=cout, cpad=cpad,
                           wmat=wmat.astype(jnp.bfloat16)))
    return params


def dcgan_g_forward(z_nchw, params, max_tile_m=512):
    """(N, z_size, 1, 1) NCHW -> (N, n_channels, S, S) NCHW.
    max_tile_m: M-tile row count (use ~512 on v5e/v6e, ~256 on v7x's 64 MiB VMEM)."""
    n, _, hz, wz = z_nchw.shape
    assert hz == 1 and wz == 1, "DCGAN_G expects a 1x1 latent input"
    x = z_nchw.reshape(n, -1).astype(jnp.bfloat16)
    act = _first_layer_forward(x, params[0], max_tile_m)
    for lp in params[1:-1]:
        act = _up_layer_forward(act, lp, max_tile_m, last=False)
    out = _up_layer_forward(act, params[-1], max_tile_m, last=True)   # NHWC f32
    return jnp.transpose(out, (0, 3, 1, 2))


# ---------------------- Pure-jnp reference (same math path) ----------------- #

def _ref_bn_relu(acc, lp, count, n_phase):
    cpad, cout = lp['cpad'], lp['cout']
    y_bf = acc.astype(jnp.bfloat16)                      # mirrors kernel bf16 writeback
    cols = acc.reshape(acc.shape[0], n_phase, cpad)[:, :, :cout]
    mean = jnp.sum(cols, axis=(0, 1)) / count
    var = jnp.maximum(jnp.sum(cols * cols, axis=(0, 1)) / count - mean * mean, 0.0)
    scale = lp['gamma'] * jax.lax.rsqrt(var + BN_EPS)
    shift = lp['beta'] - mean * scale
    scale_p = jnp.zeros((n_phase, cpad), jnp.float32).at[:, :cout].set(scale).reshape(1, -1)
    shift_p = jnp.zeros((n_phase, cpad), jnp.float32).at[:, :cout].set(shift).reshape(1, -1)
    o = y_bf.astype(jnp.float32) * scale_p + shift_p
    return jnp.maximum(o, 0.0).astype(jnp.bfloat16)


def _reference_forward(z_nchw, params):
    n = z_nchw.shape[0]
    x = z_nchw.reshape(n, -1).astype(jnp.bfloat16)
    lp = params[0]
    acc = jnp.dot(x, lp['wmat'], preferred_element_type=jnp.float32)
    act = _ref_bn_relu(acc, lp, count=float(n * K * K), n_phase=K * K)
    act = act.reshape(n, K, K, lp['cpad'])[..., :lp['cout']]
    for lp in params[1:-1]:
        nn_, h, w, _ = act.shape
        acc = jnp.dot(_make_patches_s2(act), lp['wmat'], preferred_element_type=jnp.float32)
        y = _ref_bn_relu(acc, lp, count=float(nn_ * h * w * 4), n_phase=4)
        act = _deinterleave(y, nn_, h, w, lp['cpad'], lp['cout'])
    lp = params[-1]
    nn_, h, w, _ = act.shape
    acc = jnp.dot(_make_patches_s2(act), lp['wmat'], preferred_element_type=jnp.float32)
    out = _deinterleave(jnp.clip(acc, -1.0, 1.0), nn_, h, w, lp['cpad'], lp['cout'])
    return jnp.transpose(out, (0, 3, 1, 2))


# ----------------------------------- Main ----------------------------------- #

if __name__ == "__main__":
    # Small DCGAN_G config: image_size=16 -> mult=2 -> 3 ConvTranspose layers.
    image_size, z_size, G_h_size, n_channels, batch = 16, 16, 8, 3, 2

    key = jax.random.PRNGKey(0)
    kz, kp = jax.random.split(key)
    params = init_dcgan_g_params(kp, image_size, z_size, G_h_size, n_channels)
    z = jax.random.normal(kz, (batch, z_size, 1, 1), jnp.float32)

    out = jax.block_until_ready(jax.jit(lambda zz: dcgan_g_forward(zz, params))(z))

    assert out.shape == (batch, n_channels, image_size, image_size), out.shape
    assert bool(jnp.all(jnp.isfinite(out)))
    assert bool(jnp.all(out <= 1.0)) and bool(jnp.all(out >= -1.0))   # Hardtanh range

    ref = _reference_forward(z, params)
    assert bool(jnp.allclose(out, ref, atol=2e-3, rtol=2e-3)), "mismatch vs reference"

    # Exercise the multi-tile path (cross-tile BN statistics) with a small tile.
    out_tiled = jax.block_until_ready(
        jax.jit(lambda zz: dcgan_g_forward(zz, params, max_tile_m=16))(z))
    assert bool(jnp.allclose(out_tiled, ref, atol=2e-3, rtol=2e-3)), "tiled mismatch"

    print("KERNEL_OK")
</pallas_src>

<mosaic_0001>
module attributes {stable_mosaic.version = 11 : i64} {
  func.func @_matmul_stats_kernel(%arg0: i32, %arg1: memref<2x16xbf16, #tpu.memory_space<vmem>>, %arg2: memref<16x256xbf16, #tpu.memory_space<vmem>>, %arg3: memref<2x256xbf16, #tpu.memory_space<vmem>>, %arg4: memref<1x2x256xf32, #tpu.memory_space<vmem>>) attributes {dimension_semantics = [#tpu.dimension_semantics<parallel>], iteration_bounds = array<i64: 1>, scalar_prefetch = 0 : i64, scratch_operands = 0 : i64, tpu.core_type = #tpu.core_type<tc>, window_params = [{transform_indices = @transform_0, window_bounds = array<i64: 2, 16>}, {pipeline_mode = #tpu.pipeline_mode<synchronous>, transform_indices = @transform_1, window_bounds = array<i64: 16, 256>}, {transform_indices = @transform_2, window_bounds = array<i64: 2, 256>}, {transform_indices = @transform_3, window_bounds = array<i64: 1, 2, 256>}]} {
    %c0 = arith.constant 0 : index
    %c0_0 = arith.constant 0 : index
    %0 = vector.load %arg1[%c0, %c0_0] : memref<2x16xbf16, #tpu.memory_space<vmem>>, vector<2x16xbf16>
    %c0_1 = arith.constant 0 : index
    %c0_2 = arith.constant 0 : index
    %1 = vector.load %arg2[%c0_1, %c0_2] : memref<16x256xbf16, #tpu.memory_space<vmem>>, vector<16x256xbf16>
    %cst = arith.constant dense<0.000000e+00> : vector<2x256xf32>
    %2 = tpu.matmul %0, %1, %cst {dimension_numbers = #tpu.dot_dimension_numbers<[1], [0], [0], [1], [0, 0, 1, 1], [], []>} : vector<2x16xbf16>, vector<16x256xbf16>, vector<2x256xf32> -> vector<2x256xf32>
    %3 = arith.truncf %2 : vector<2x256xf32> to vector<2x256xbf16>
    %c0_3 = arith.constant 0 : index
    %c0_4 = arith.constant 0 : index
    %4 = vector.load %arg3[%c0_3, %c0_4] : memref<2x256xbf16, #tpu.memory_space<vmem>>, vector<2x256xbf16>
    tpu.vector_store %arg3[%c0_3, %c0_4], %3 {strides = array<i32>} : memref<2x256xbf16, #tpu.memory_space<vmem>>, vector<2x256xbf16>,
    %cst_5 = arith.constant dense<0.000000e+00> : vector<256xf32>
    %5 = vector.multi_reduction <add>, %2, %cst_5 [0] : vector<2x256xf32> to vector<256xf32>
    %6 = vector.shape_cast %5 : vector<256xf32> to vector<1x256xf32>
    %7 = vector.shape_cast %6 : vector<1x256xf32> to vector<1x1x256xf32>
    %c0_6 = arith.constant 0 : index
    %c0_7 = arith.constant 0 : index
    %c0_8 = arith.constant 0 : index
    %8 = vector.load %arg4[%c0_6, %c0_7, %c0_8] : memref<1x2x256xf32, #tpu.memory_space<vmem>>, vector<1x1x256xf32>
    tpu.vector_store %arg4[%c0_6, %c0_7, %c0_8], %7 {strides = array<i32>} : memref<1x2x256xf32, #tpu.memory_space<vmem>>, vector<1x1x256xf32>,
    %9 = arith.mulf %2, %2 : vector<2x256xf32>
    %cst_9 = arith.constant dense<0.000000e+00> : vector<256xf32>
    %10 = vector.multi_reduction <add>, %9, %cst_9 [0] : vector<2x256xf32> to vector<256xf32>
    %11 = vector.shape_cast %10 : vector<256xf32> to vector<1x256xf32>
    %12 = vector.shape_cast %11 : vector<1x256xf32> to vector<1x1x256xf32>
    %c0_10 = arith.constant 0 : index
    %c1 = arith.constant 1 : index
    %c0_11 = arith.constant 0 : index
    %13 = vector.load %arg4[%c0_10, %c1, %c0_11] : memref<1x2x256xf32, #tpu.memory_space<vmem>>, vector<1x1x256xf32>
    tpu.vector_store %arg4[%c0_10, %c1, %c0_11], %12 {strides = array<i32>} : memref<1x2x256xf32, #tpu.memory_space<vmem>>, vector<1x1x256xf32>,
    return
  }
  func.func @transform_0(%arg0: i32) -> (i32, i32) {
    %c0_i32 = arith.constant 0 : i32
    %c0_i32_0 = arith.constant 0 : i32
    return %arg0, %c0_i32 : i32, i32
  }
  func.func @transform_1(%arg0: i32) -> (i32, i32) {
    %c0_i32 = arith.constant 0 : i32
    %c0_i32_0 = arith.constant 0 : i32
    %c0_i32_1 = arith.constant 0 : i32
    return %c0_i32, %c0_i32_0 : i32, i32
  }
  func.func @transform_2(%arg0: i32) -> (i32, i32) {
    %c0_i32 = arith.constant 0 : i32
    %c0_i32_0 = arith.constant 0 : i32
    return %arg0, %c0_i32 : i32, i32
  }
  func.func @transform_3(%arg0: i32) -> (i32, i32, i32) {
    %c0_i32 = arith.constant 0 : i32
    %c0_i32_0 = arith.constant 0 : i32
    %c0_i32_1 = arith.constant 0 : i32
    return %arg0, %c0_i32, %c0_i32_0 : i32, i32, i32
  }
}

module attributes {stable_mosaic.version = 11 : i64} {
  func.func @_bn_relu_kernel(%arg0: i32, %arg1: memref<2x256xbf16, #tpu.memory_space<vmem>>, %arg2: memref<1x256xf32, #tpu.memory_space<vmem>>, %arg3: memref<1x256xf32, #tpu.memory_space<vmem>>, %arg4: memref<2x256xbf16, #tpu.memory_space<vmem>>) attributes {dimension_semantics = [#tpu.dimension_semantics<parallel>], iteration_bounds = array<i64: 1>, scalar_prefetch = 0 : i64, scratch_operands = 0 : i64, tpu.core_type = #tpu.core_type<tc>, window_params = [{transform_indices = @transform_0, window_bounds = array<i64: 2, 256>}, {pipeline_mode = #tpu.pipeline_mode<synchronous>, transform_indices = @transform_1, window_bounds = array<i64: 1, 256>}, {pipeline_mode = #tpu.pipeline_mode<synchronous>, transform_indices = @transform_2, window_bounds = array<i64: 1, 256>}, {transform_indices = @transform_3, window_bounds = array<i64: 2, 256>}]} {
    %c0 = arith.constant 0 : index
    %c0_0 = arith.constant 0 : index
    %0 = vector.load %arg1[%c0, %c0_0] : memref<2x256xbf16, #tpu.memory_space<vmem>>, vector<2x256xbf16>
    %1 = arith.extf %0 : vector<2x256xbf16> to vector<2x256xf32>
    %c0_1 = arith.constant 0 : index
    %c0_2 = arith.constant 0 : index
    %2 = vector.load %arg2[%c0_1, %c0_2] : memref<1x256xf32, #tpu.memory_space<vmem>>, vector<1x256xf32>
    %3 = vector.broadcast %2 : vector<1x256xf32> to vector<2x256xf32>
    %4 = arith.mulf %1, %3 : vector<2x256xf32>
    %c0_3 = arith.constant 0 : index
    %c0_4 = arith.constant 0 : index
    %5 = vector.load %arg3[%c0_3, %c0_4] : memref<1x256xf32, #tpu.memory_space<vmem>>, vector<1x256xf32>
    %6 = vector.broadcast %5 : vector<1x256xf32> to vector<2x256xf32>
    %7 = arith.addf %4, %6 : vector<2x256xf32>
    %cst = arith.constant 0.000000e+00 : f32
    %8 = vector.broadcast %cst : f32 to vector<2x256xf32>
    %9 = arith.maximumf %7, %8 : vector<2x256xf32>
    %10 = arith.truncf %9 : vector<2x256xf32> to vector<2x256xbf16>
    %c0_5 = arith.constant 0 : index
    %c0_6 = arith.constant 0 : index
    %11 = vector.load %arg4[%c0_5, %c0_6] : memref<2x256xbf16, #tpu.memory_space<vmem>>, vector<2x256xbf16>
    tpu.vector_store %arg4[%c0_5, %c0_6], %10 {strides = array<i32>} : memref<2x256xbf16, #tpu.memory_space<vmem>>, vector<2x256xbf16>,
    return
  }
  func.func @transform_0(%arg0: i32) -> (i32, i32) {
    %c0_i32 = arith.constant 0 : i32
    %c0_i32_0 = arith.constant 0 : i32
    return %arg0, %c0_i32 : i32, i32
  }
  func.func @transform_1(%arg0: i32) -> (i32, i32) {
    %c0_i32 = arith.constant 0 : i32
    %c0_i32_0 = arith.constant 0 : i32
    %c0_i32_1 = arith.constant 0 : i32
    return %c0_i32, %c0_i32_0 : i32, i32
  }
  func.func @transform_2(%arg0: i32) -> (i32, i32) {
    %c0_i32 = arith.constant 0 : i32
    %c0_i32_0 = arith.constant 0 : i32
    %c0_i32_1 = arith.constant 0 : i32
    return %c0_i32, %c0_i32_0 : i32, i32
  }
  func.func @transform_3(%arg0: i32) -> (i32, i32) {
    %c0_i32 = arith.constant 0 : i32
    %c0_i32_0 = arith.constant 0 : i32
    return %arg0, %c0_i32 : i32, i32
  }
}

module attributes {stable_mosaic.version = 11 : i64} {
  func.func @_matmul_stats_kernel(%arg0: i32, %arg1: memref<32x144xbf16, #tpu.memory_space<vmem>>, %arg2: memref<144x128xbf16, #tpu.memory_space<vmem>>, %arg3: memref<32x128xbf16, #tpu.memory_space<vmem>>, %arg4: memref<1x2x128xf32, #tpu.memory_space<vmem>>) attributes {dimension_semantics = [#tpu.dimension_semantics<parallel>], iteration_bounds = array<i64: 1>, scalar_prefetch = 0 : i64, scratch_operands = 0 : i64, tpu.core_type = #tpu.core_type<tc>, window_params = [{transform_indices = @transform_0, window_bounds = array<i64: 32, 144>}, {pipeline_mode = #tpu.pipeline_mode<synchronous>, transform_indices = @transform_1, window_bounds = array<i64: 144, 128>}, {transform_indices = @transform_2, window_bounds = array<i64: 32, 128>}, {transform_indices = @transform_3, window_bounds = array<i64: 1, 2, 128>}]} {
    %c0 = arith.constant 0 : index
    %c0_0 = arith.constant 0 : index
    %0 = vector.load %arg1[%c0, %c0_0] : memref<32x144xbf16, #tpu.memory_space<vmem>>, vector<32x144xbf16>
    %c0_1 = arith.constant 0 : index
    %c0_2 = arith.constant 0 : index
    %1 = vector.load %arg2[%c0_1, %c0_2] : memref<144x128xbf16, #tpu.memory_space<vmem>>, vector<144x128xbf16>
    %cst = arith.constant dense<0.000000e+00> : vector<32x128xf32>
    %2 = tpu.matmul %0, %1, %cst {dimension_numbers = #tpu.dot_dimension_numbers<[1], [0], [0], [1], [0, 0, 1, 1], [], []>} : vector<32x144xbf16>, vector<144x128xbf16>, vector<32x128xf32> -> vector<32x128xf32>
    %3 = arith.truncf %2 : vector<32x128xf32> to vector<32x128xbf16>
    %c0_3 = arith.constant 0 : index
    %c0_4 = arith.constant 0 : index
    %4 = vector.load %arg3[%c0_3, %c0_4] : memref<32x128xbf16, #tpu.memory_space<vmem>>, vector<32x128xbf16>
    tpu.vector_store %arg3[%c0_3, %c0_4], %3 {strides = array<i32>} : memref<32x128xbf16, #tpu.memory_space<vmem>>, vector<32x128xbf16>,
    %cst_5 = arith.constant dense<0.000000e+00> : vector<128xf32>
    %5 = vector.multi_reduction <add>, %2, %cst_5 [0] : vector<32x128xf32> to vector<128xf32>
    %6 = vector.shape_cast %5 : vector<128xf32> to vector<1x128xf32>
    %7 = vector.shape_cast %6 : vector<1x128xf32> to vector<1x1x128xf32>
    %c0_6 = arith.constant 0 : index
    %c0_7 = arith.constant 0 : index
    %c0_8 = arith.constant 0 : index
    %8 = vector.load %arg4[%c0_6, %c0_7, %c0_8] : memref<1x2x128xf32, #tpu.memory_space<vmem>>, vector<1x1x128xf32>
    tpu.vector_store %arg4[%c0_6, %c0_7, %c0_8], %7 {strides = array<i32>} : memref<1x2x128xf32, #tpu.memory_space<vmem>>, vector<1x1x128xf32>,
    %9 = arith.mulf %2, %2 : vector<32x128xf32>
    %cst_9 = arith.constant dense<0.000000e+00> : vector<128xf32>
    %10 = vector.multi_reduction <add>, %9, %cst_9 [0] : vector<32x128xf32> to vector<128xf32>
    %11 = vector.shape_cast %10 : vector<128xf32> to vector<1x128xf32>
    %12 = vector.shape_cast %11 : vector<1x128xf32> to vector<1x1x128xf32>
    %c0_10 = arith.constant 0 : index
    %c1 = arith.constant 1 : index
    %c0_11 = arith.constant 0 : index
    %13 = vector.load %arg4[%c0_10, %c1, %c0_11] : memref<1x2x128xf32, #tpu.memory_space<vmem>>, vector<1x1x128xf32>
    tpu.vector_store %arg4[%c0_10, %c1, %c0_11], %12 {strides = array<i32>} : memref<1x2x128xf32, #tpu.memory_space<vmem>>, vector<1x1x128xf32>,
    return
  }
  func.func @transform_0(%arg0: i32) -> (i32, i32) {
    %c0_i32 = arith.constant 0 : i32
    %c0_i32_0 = arith.constant 0 : i32
    return %arg0, %c0_i32 : i32, i32
  }
  func.func @transform_1(%arg0: i32) -> (i32, i32) {
    %c0_i32 = arith.constant 0 : i32
    %c0_i32_0 = arith.constant 0 : i32
    %c0_i32_1 = arith.constant 0 : i32
    return %c0_i32, %c0_i32_0 : i32, i32
  }
  func.func @transform_2(%arg0: i32) -> (i32, i32) {
    %c0_i32 = arith.constant 0 : i32
    %c0_i32_0 = arith.constant 0 : i32
    return %arg0, %c0_i32 : i32, i32
  }
  func.func @transform_3(%arg0: i32) -> (i32, i32, i32) {
    %c0_i32 = arith.constant 0 : i32
    %c0_i32_0 = arith.constant 0 : i32
    %c0_i32_1 = arith.constant 0 : i32
    return %arg0, %c0_i32, %c0_i32_0 : i32, i32, i32
  }
}

module attributes {stable_mosaic.version = 11 : i64} {
  func.func @_bn_relu_kernel(%arg0: i32, %arg1: memref<32x128xbf16, #tpu.memory_space<vmem>>, %arg2: memref<1x128xf32, #tpu.memory_space<vmem>>, %arg3: memref<1x128xf32, #tpu.memory_space<vmem>>, %arg4: memref<32x128xbf16, #tpu.memory_space<vmem>>) attributes {dimension_semantics = [#tpu.dimension_semantics<parallel>], iteration_bounds = array<i64: 1>, scalar_prefetch = 0 : i64, scratch_operands = 0 : i64, tpu.core_type = #tpu.core_type<tc>, window_params = [{transform_indices = @transform_0, window_bounds = array<i64: 32, 128>}, {pipeline_mode = #tpu.pipeline_mode<synchronous>, transform_indices = @transform_1, window_bounds = array<i64: 1, 128>}, {pipeline_mode = #tpu.pipeline_mode<synchronous>, transform_indices = @transform_2, window_bounds = array<i64: 1, 128>}, {transform_indices = @transform_3, window_bounds = array<i64: 32, 128>}]} {
    %c0 = arith.constant 0 : index
    %c0_0 = arith.constant 0 : index
    %0 = vector.load %arg1[%c0, %c0_0] : memref<32x128xbf16, #tpu.memory_space<vmem>>, vector<32x128xbf16>
    %1 = arith.extf %0 : vector<32x128xbf16> to vector<32x128xf32>
    %c0_1 = arith.constant 0 : index
    %c0_2 = arith.constant 0 : index
    %2 = vector.load %arg2[%c0_1, %c0_2] : memref<1x128xf32, #tpu.memory_space<vmem>>, vector<1x128xf32>
    %3 = vector.broadcast %2 : vector<1x128xf32> to vector<32x128xf32>
    %4 = arith.mulf %1, %3 : vector<32x128xf32>
    %c0_3 = arith.constant 0 : index
    %c0_4 = arith.constant 0 : index
    %5 = vector.load %arg3[%c0_3, %c0_4] : memref<1x128xf32, #tpu.memory_space<vmem>>, vector<1x128xf32>
    %6 = vector.broadcast %5 : vector<1x128xf32> to vector<32x128xf32>
    %7 = arith.addf %4, %6 : vector<32x128xf32>
    %cst = arith.constant 0.000000e+00 : f32
    %8 = vector.broadcast %cst : f32 to vector<32x128xf32>
    %9 = arith.maximumf %7, %8 : vector<32x128xf32>
    %10 = arith.truncf %9 : vector<32x128xf32> to vector<32x128xbf16>
    %c0_5 = arith.constant 0 : index
    %c0_6 = arith.constant 0 : index
    %11 = vector.load %arg4[%c0_5, %c0_6] : memref<32x128xbf16, #tpu.memory_space<vmem>>, vector<32x128xbf16>
    tpu.vector_store %arg4[%c0_5, %c0_6], %10 {strides = array<i32>} : memref<32x128xbf16, #tpu.memory_space<vmem>>, vector<32x128xbf16>,
    return
  }
  func.func @transform_0(%arg0: i32) -> (i32, i32) {
    %c0_i32 = arith.constant 0 : i32
    %c0_i32_0 = arith.constant 0 : i32
    return %arg0, %c0_i32 : i32, i32
  }
  func.func @transform_1(%arg0: i32) -> (i32, i32) {
    %c0_i32 = arith.constant 0 : i32
    %c0_i32_0 = arith.constant 0 : i32
    %c0_i32_1 = arith.constant 0 : i32
    return %c0_i32, %c0_i32_0 : i32, i32
  }
  func.func @transform_2(%arg0: i32) -> (i32, i32) {
    %c0_i32 = arith.constant 0 : i32
    %c0_i32_0 = arith.constant 0 : i32
    %c0_i32_1 = arith.constant 0 : i32
    return %c0_i32, %c0_i32_0 : i32, i32
  }
  func.func @transform_3(%arg0: i32) -> (i32, i32) {
    %c0_i32 = arith.constant 0 : i32
    %c0_i32_0 = arith.constant 0 : i32
    return %arg0, %c0_i32 : i32, i32
  }
}

module attributes {stable_mosaic.version = 11 : i64} {
  func.func @_matmul_hardtanh_kernel(%arg0: i32, %arg1: memref<128x72xbf16, #tpu.memory_space<vmem>>, %arg2: memref<72x128xbf16, #tpu.memory_space<vmem>>, %arg3: memref<128x128xf32, #tpu.memory_space<vmem>>) attributes {dimension_semantics = [#tpu.dimension_semantics<parallel>], iteration_bounds = array<i64: 1>, scalar_prefetch = 0 : i64, scratch_operands = 0 : i64, tpu.core_type = #tpu.core_type<tc>, window_params = [{transform_indices = @transform_0, window_bounds = array<i64: 128, 72>}, {pipeline_mode = #tpu.pipeline_mode<synchronous>, transform_indices = @transform_1, window_bounds = array<i64: 72, 128>}, {transform_indices = @transform_2, window_bounds = array<i64: 128, 128>}]} {
    %c0 = arith.constant 0 : index
    %c0_0 = arith.constant 0 : index
    %0 = vector.load %arg1[%c0, %c0_0] : memref<128x72xbf16, #tpu.memory_space<vmem>>, vector<128x72xbf16>
    %c0_1 = arith.constant 0 : index
    %c0_2 = arith.constant 0 : index
    %1 = vector.load %arg2[%c0_1, %c0_2] : memref<72x128xbf16, #tpu.memory_space<vmem>>, vector<72x128xbf16>
    %cst = arith.constant dense<0.000000e+00> : vector<128x128xf32>
    %2 = tpu.matmul %0, %1, %cst {dimension_numbers = #tpu.dot_dimension_numbers<[1], [0], [0], [1], [0, 0, 1, 1], [], []>} : vector<128x72xbf16>, vector<72x128xbf16>, vector<128x128xf32> -> vector<128x128xf32>
    %cst_3 = arith.constant -1.000000e+00 : f32
    %cst_4 = arith.constant 1.000000e+00 : f32
    %3 = vector.broadcast %cst_3 : f32 to vector<128x128xf32>
    %4 = arith.maximumf %3, %2 : vector<128x128xf32>
    %5 = vector.broadcast %cst_4 : f32 to vector<128x128xf32>
    %6 = arith.minimumf %5, %4 : vector<128x128xf32>
    %c0_5 = arith.constant 0 : index
    %c0_6 = arith.constant 0 : index
    %7 = vector.load %arg3[%c0_5, %c0_6] : memref<128x128xf32, #tpu.memory_space<vmem>>, vector<128x128xf32>
    tpu.vector_store %arg3[%c0_5, %c0_6], %6 {strides = array<i32>} : memref<128x128xf32, #tpu.memory_space<vmem>>, vector<128x128xf32>,
    return
  }
  func.func @transform_0(%arg0: i32) -> (i32, i32) {
    %c0_i32 = arith.constant 0 : i32
    %c0_i32_0 = arith.constant 0 : i32
    return %arg0, %c0_i32 : i32, i32
  }
  func.func @transform_1(%arg0: i32) -> (i32, i32) {
    %c0_i32 = arith.constant 0 : i32
    %c0_i32_0 = arith.constant 0 : i32
    %c0_i32_1 = arith.constant 0 : i32
    return %c0_i32, %c0_i32_0 : i32, i32
  }
  func.func @transform_2(%arg0: i32) -> (i32, i32) {
    %c0_i32 = arith.constant 0 : i32
    %c0_i32_0 = arith.constant 0 : i32
    return %arg0, %c0_i32 : i32, i32
  }
}

</mosaic_0001>

<llo_original>
// kernel: _lambda_.5
$region0: #{_lambda_.5}
  #allocation0 [shape = 'u32[]', space=smem, size = 0x4, offset = 0x4, fixed_abs, tag = 'smem constant byte address 0x4 - core index']
  #allocation1 [shape = 'u32[144,128]{1,0:T(1,128)}', space=vmem, size = 0x12000, scoped, tag = 'internal scratch']
  %s0 = inlined_call_operand.vmem [shape: bf16[2,16], index: 0, kind: input, shape index: {}]
  %s1 = inlined_call_operand.vmem [shape: bf16[16,256], index: 1, kind: input, shape index: {}]
  %s2 = inlined_call_operand.vmem [shape: bf16[2,256], index: 2, kind: output, shape index: {0}]
  %s3 = inlined_call_operand.vmem [shape: f32[1,2,256], index: 3, kind: output, shape index: {1}]
  %4 = xla_tuple %s2, %s3
  %s5 = sld [smem:[#allocation0]]
  $region26: #{_lambda_.5} parent=0
    _
  %s7 = ssub.s32 1, %s5
  %s8 = scalar_select 0, %s7, %s5
  // Predicated region
  $region2: #{_lambda_.5} parent=0 // pred_check
    _
  $region3: #{_lambda_.5} parent=0 // pred_check_branch
    %10 = sbr.rel (0) target = $region5
  $region4: #{_lambda_.5} parent=0 // pred_region
    _
  $region5: #{_lambda_.5} parent=0 // pred_fallthru
    _
  // Predicated region
  $region6: #{_lambda_.5} parent=0 // pred_check
    _
  $region7: #{_lambda_.5} parent=0 // pred_check_branch
    %12 = sbr.rel (0) target = $region9
  $region8: #{_lambda_.5} parent=0 // pred_region
    _
  $region9: #{_lambda_.5} parent=0 // pred_fallthru
    _
  %v14 = vld [vmem:[%s0] sm:$0x1]
  %v15 = vld [vmem:[%s1] sm:$0xff]
  %v16 = vld [vmem:[%s1 + $0x8] sm:$0xff]
  %v19 = vunpack.c.l.b16 %v15
  %v20 = vunpack.c.h.b16 %v15
  %v21 = vunpack.c.l.b16 %v16
  %v22 = vunpack.c.h.b16 %v16
  %v23 = vpack.c.b16 %v21, %v19
  %v24 = vpack.c.b16 %v22, %v20
  %vm27 = vcmask 130048
  %v29 = vsel %vm27, %v14, 0
  %31 = vmatprep.subr.bf16.mxu0 %v24
  %32 = vmatpush1.bf16.msra.mxu0 %v23
  %33 = vmatprep.subr.bf16.mxu0 0
  %34 = vmatpush1.bf16.msra.mxu0 0
  %35 = vmatprep.subr.bf16.mxu0 0
  %36 = vmatpush1.bf16.msra.mxu0 0
  %37 = vmatprep.subr.bf16.mxu0 0
  %38 = vmatpush1.bf16.msra.mxu0 0
  %39 = vmatprep.subr.bf16.mxu0 0
  %40 = vmatpush1.bf16.msra.mxu0 0
  %41 = vmatprep.subr.bf16.mxu0 0
  %42 = vmatpush1.bf16.msra.mxu0 0
  %43 = vmatprep.subr.bf16.mxu0 0
  %44 = vmatpush1.bf16.msra.mxu0 0
  %45 = vmatprep.subr.bf16.mxu0 0
  %46 = vmatpush1.bf16.msra.mxu0 0
  %47 = vmatprep.subr.bf16.mxu0 0
  %48 = vmatpush1.bf16.msra.mxu0 0
  %49 = vmatprep.subr.bf16.mxu0 0
  %50 = vmatpush1.bf16.msra.mxu0 0
  %51 = vmatprep.subr.bf16.mxu0 0
  %52 = vmatpush1.bf16.msra.mxu0 0
  %53 = vmatprep.subr.bf16.mxu0 0
  %54 = vmatpush1.bf16.msra.mxu0 0
  %55 = vmatprep.subr.bf16.mxu0 0
  %56 = vmatpush1.bf16.msra.mxu0 0
  %57 = vmatprep.subr.bf16.mxu0 0
  %58 = vmatpush1.bf16.msra.mxu0 0
  %59 = vmatprep.subr.bf16.mxu0 0
  %60 = vmatpush1.bf16.msra.mxu0 0
  %61 = vmatprep.subr.bf16.mxu0 0
  %62 = vmatpush1.bf16.msra.mxu0 0
  %63 = vmatprep.mubr.bf16.mxu0 0
  %64 = vmatmul.mubr.bf16.gmra.mrb[0].mxu0 %v29
  %v65 = vpop.f32.mrb[0].mxu0
  %v66 = vadd.f32 0.0, %v65
  %v67 = vpop.f32.mrb[0].mxu0
  %v68 = vadd.f32 0.0, %v67
  %v69 = vpop.f32.mrb[0].mxu0
  %v70 = vpop.f32.mrb[0].mxu0
  %71 = vdwg.mxu0
  %v72 = vpack.c.bf16 %v66, %v66
  %v73 = vpack.c.bf16 %v68, %v68
  %v76 = vcombine.low %v72, %v73
  %v78 = vunpack.c.l.s4 1966171168
  %v79 = vunpack.c.0.s8 %v78
  %v80 = vlaneseq
  %v81 = vshrl.u32 %v80, 7
  %v82 = vsub.s32 %v79, %v81
  %v83 = vrot.slane %v76, %v82
  %v85 = vunpack.c.l.s4 1966171168
  %v86 = vunpack.c.0.s8 %v85
  %v87 = vlaneseq
  %v88 = vshrl.u32 %v87, 7
  %v89 = vsub.s32 %v86, %v88
  %v90 = vrot.slane %v83, %v89
  %92 = vst [vmem:[%s2] sm:$0x3] %v90
  %vm93 = vcmask 1041408
  %v94 = vsel %vm93, %v66, 0.0
  %v95 = vrot.slane %v94, 4
  %v96 = vadd.f32 %v94, %v95
  %v97 = vrot.slane %v96, 2
  %v98 = vadd.f32 %v96, %v97
  %v99 = vrot.slane %v98, 1
  %v100 = vadd.f32 %v98, %v99
  %v101 = vsel %vm93, %v68, 0.0
  %v102 = vrot.slane %v101, 4
  %v103 = vadd.f32 %v101, %v102
  %v104 = vrot.slane %v103, 2
  %v105 = vadd.f32 %v103, %v104
  %v106 = vrot.slane %v105, 1
  %v107 = vadd.f32 %v105, %v106
  %v110 = vcombine.low %v100, %v107
  %v112 = vunpack.c.l.s4 1966171168
  %v113 = vunpack.c.0.s8 %v112
  %v114 = vlaneseq
  %v115 = vshrl.u32 %v114, 7
  %v116 = vsub.s32 %v113, %v115
  %v117 = vrot.slane %v110, %v116
  %v119 = vunpack.c.l.s4 1966171168
  %v120 = vunpack.c.0.s8 %v119
  %v121 = vlaneseq
  %v122 = vshrl.u32 %v121, 7
  %v123 = vsub.s32 %v120, %v122
  %v124 = vrot.slane %v117, %v123
  %v126 = vlaneseq
  %vm127 = vcmp.ge.s32.totalorder %v126, 0
  %vm128 = vcmp.lt.s32.totalorder %v126, 256
  %vm129 = vmand %vm127, %vm128
  %130 = vst.msk [vmem:[%s3] ss:$2 sm:$0x3] %vm129, %v124
  %v131 = vmul.f32 %v66, %v66
  %v132 = vmul.f32 %v68, %v68
  %v133 = vsel %vm93, %v131, 0.0
  %v134 = vrot.slane %v133, 4
  %v135 = vadd.f32 %v133, %v134
  %v136 = vrot.slane %v135, 2
  %v137 = vadd.f32 %v135, %v136
  %v138 = vrot.slane %v137, 1
  %v139 = vadd.f32 %v137, %v138
  %v140 = vsel %vm93, %v132, 0.0
  %v141 = vrot.slane %v140, 4
  %v142 = vadd.f32 %v140, %v141
  %v143 = vrot.slane %v142, 2
  %v144 = vadd.f32 %v142, %v143
  %v145 = vrot.slane %v144, 1
  %v146 = vadd.f32 %v144, %v145
  %v149 = vcombine.low %v139, %v146
  %v151 = vunpack.c.l.s4 1966171168
  %v152 = vunpack.c.0.s8 %v151
  %v153 = vlaneseq
  %v154 = vshrl.u32 %v153, 7
  %v155 = vsub.s32 %v152, %v154
  %v156 = vrot.slane %v149, %v155
  %v158 = vunpack.c.l.s4 1966171168
  %v159 = vunpack.c.0.s8 %v158
  %v160 = vlaneseq
  %v161 = vshrl.u32 %v160, 7
  %v162 = vsub.s32 %v159, %v161
  %v163 = vrot.slane %v156, %v162
  %s165 = scalar_lea.vmem %s3, 1
  %166 = vst.msk [vmem:[%s165] ss:$2 sm:$0x3] %vm129, %v163
  // Predicated region
  $region10: #{_lambda_.5} parent=0 // pred_check
    _
  $region11: #{_lambda_.5} parent=0 // pred_check_branch
    %168 = sbr.rel (0) target = $region13
  $region12: #{_lambda_.5} parent=0 // pred_region
    _
  $region13: #{_lambda_.5} parent=0 // pred_fallthru
    _
  // Predicated region
  $region14: #{_lambda_.5} parent=0 // pred_check
    _
  $region15: #{_lambda_.5} parent=0 // pred_check_branch
    %170 = sbr.rel (0) target = $region17
  $region16: #{_lambda_.5} parent=0 // pred_region
    _
  $region17: #{_lambda_.5} parent=0 // pred_fallthru
    _
  // Predicated region
  $region18: #{_lambda_.5} parent=0 // pred_check
    _
  $region19: #{_lambda_.5} parent=0 // pred_check_branch
    %172 = sbr.rel (0) target = $region21
  $region20: #{_lambda_.5} parent=0 // pred_region
    _
  $region21: #{_lambda_.5} parent=0 // pred_fallthru
    _
  // Predicated region
  $region22: #{_lambda_.5} parent=0 // pred_check
    _
  $region23: #{_lambda_.5} parent=0 // pred_check_branch
    %174 = sbr.rel (0) target = $region25
  $region24: #{_lambda_.5} parent=0 // pred_region
    _
  $region25: #{_lambda_.5} parent=0 // pred_fallthru
    _

// kernel: _lambda_.6
$region0: #{_lambda_.6}
  #allocation0 [shape = 'u32[]', space=smem, size = 0x4, offset = 0x4, fixed_abs, tag = 'smem constant byte address 0x4 - core index']
  #allocation1 [shape = 'u32[144,128]{1,0:T(1,128)}', space=vmem, size = 0x12000, scoped, tag = 'internal scratch']
  %s0 = inlined_call_operand.vmem [shape: bf16[2,256], index: 0, kind: input, shape index: {}]
  %s1 = inlined_call_operand.vmem [shape: f32[1,256], index: 1, kind: input, shape index: {}]
  %s2 = inlined_call_operand.vmem [shape: f32[1,256], index: 2, kind: input, shape index: {}]
  %s3 = inlined_call_operand.vmem [shape: bf16[2,256], index: 3, kind: output, shape index: {}]
  %s4 = sld [smem:[#allocation0]]
  $region22: #{_lambda_.6} parent=0
    _
  %s6 = ssub.s32 1, %s4
  %s7 = scalar_select 0, %s6, %s4
  // Predicated region
  $region2: #{_lambda_.6} parent=0 // pred_check
    _
  $region3: #{_lambda_.6} parent=0 // pred_check_branch
    %9 = sbr.rel (0) target = $region5
  $region4: #{_lambda_.6} parent=0 // pred_region
    _
  $region5: #{_lambda_.6} parent=0 // pred_fallthru
    _
  // Predicated region
  $region6: #{_lambda_.6} parent=0 // pred_check
    _
  $region7: #{_lambda_.6} parent=0 // pred_check_branch
    %11 = sbr.rel (0) target = $region9
  $region8: #{_lambda_.6} parent=0 // pred_region
    _
  $region9: #{_lambda_.6} parent=0 // pred_fallthru
    _
  // Predicated region
  $region10: #{_lambda_.6} parent=0 // pred_check
    _
  $region11: #{_lambda_.6} parent=0 // pred_check_branch
    %13 = sbr.rel (0) target = $region13
  $region12: #{_lambda_.6} parent=0 // pred_region
    _
  $region13: #{_lambda_.6} parent=0 // pred_fallthru
    _
  %v14 = vld [vmem:[%s0] sm:$0x3]
  %v15 = vunpack.c.l.bf16 %v14
  %v16 = vld [vmem:[%s1] sm:$0x3]
  %v18 = vlaneseq
  %v19 = vshrl.u32 %v18, 7
  %v20 = vsub.s32 0, %v19
  %v21 = vrot.slane %v16, %v20
  %v22 = vlaneseq
  %v23 = vshrl.u32 %v22, 7
  %v24 = vsub.s32 1, %v23
  %v25 = vrot.slane %v16, %v24
  %v26 = vcombine.low %v21, %v25
  %v28 = vunpack.c.l.s4 1983009808
  %v29 = vunpack.c.0.s8 %v28
  %v30 = vlaneseq
  %v31 = vshrl.u32 %v30, 7
  %v32 = vsub.s32 %v29, %v31
  %v33 = vrot.slane %v26, %v32
  %v35 = vmul.f32 %v15, %v33
  %v36 = vld [vmem:[%s2] sm:$0x3]
  %v38 = vlaneseq
  %v39 = vshrl.u32 %v38, 7
  %v40 = vsub.s32 0, %v39
  %v41 = vrot.slane %v36, %v40
  %v42 = vlaneseq
  %v43 = vshrl.u32 %v42, 7
  %v44 = vsub.s32 1, %v43
  %v45 = vrot.slane %v36, %v44
  %v46 = vcombine.low %v41, %v45
  %v48 = vunpack.c.l.s4 1983009808
  %v49 = vunpack.c.0.s8 %v48
  %v50 = vlaneseq
  %v51 = vshrl.u32 %v50, 7
  %v52 = vsub.s32 %v49, %v51
  %v53 = vrot.slane %v46, %v52
  %v55 = vadd.f32 %v35, %v53
  %v56 = vmax.f32 %v55, 0.0
  %v59 = vunpack.c.l.s4 1983009808
  %v60 = vunpack.c.0.s8 %v59
  %v61 = vlaneseq
  %v62 = vshrl.u32 %v61, 7
  %v63 = vsub.s32 %v60, %v62
  %v64 = vrot.slane %v56, %v63
  %v65 = vcombine.high %v64, %v64
  %v68 = vpack.c.bf16 %v64, %v64
  %v69 = vpack.c.bf16 %v65, %v65
  %v72 = vcombine.low %v68, %v69
  %v74 = vunpack.c.l.s4 1966171168
  %v75 = vunpack.c.0.s8 %v74
  %v76 = vlaneseq
  %v77 = vshrl.u32 %v76, 7
  %v78 = vsub.s32 %v75, %v77
  %v79 = vrot.slane %v72, %v78
  %v81 = vunpack.c.l.s4 1966171168
  %v82 = vunpack.c.0.s8 %v81
  %v83 = vlaneseq
  %v84 = vshrl.u32 %v83, 7
  %v85 = vsub.s32 %v82, %v84
  %v86 = vrot.slane %v79, %v85
  %88 = vst [vmem:[%s3] sm:$0x3] %v86
  // Predicated region
  $region14: #{_lambda_.6} parent=0 // pred_check
    _
  $region15: #{_lambda_.6} parent=0 // pred_check_branch
    %90 = sbr.rel (0) target = $region17
  $region16: #{_lambda_.6} parent=0 // pred_region
    _
  $region17: #{_lambda_.6} parent=0 // pred_fallthru
    _
  // Predicated region
  $region18: #{_lambda_.6} parent=0 // pred_check
    _
  $region19: #{_lambda_.6} parent=0 // pred_check_branch
    %92 = sbr.rel (0) target = $region21
  $region20: #{_lambda_.6} parent=0 // pred_region
    _
  $region21: #{_lambda_.6} parent=0 // pred_fallthru
    _

// kernel: _lambda_.8
$region0: #{_lambda_.8}
  #allocation0 [shape = 'u32[]', space=smem, size = 0x4, offset = 0x4, fixed_abs, tag = 'smem constant byte address 0x4 - core index']
  #allocation1 [shape = 'u32[144,128]{1,0:T(1,128)}', space=vmem, size = 0x12000, scoped, tag = 'internal scratch']
  %s0 = inlined_call_operand.vmem [shape: bf16[32,128], index: 0, kind: input, shape index: {}]
  %s1 = inlined_call_operand.vmem [shape: f32[1,128], index: 1, kind: input, shape index: {}]
  %s2 = inlined_call_operand.vmem [shape: f32[1,128], index: 2, kind: input, shape index: {}]
  %s3 = inlined_call_operand.vmem [shape: bf16[32,128], index: 3, kind: output, shape index: {}]
  %s4 = sld [smem:[#allocation0]]
  $region22: #{_lambda_.8} parent=0
    _
  %s6 = ssub.s32 1, %s4
  %s7 = scalar_select 0, %s6, %s4
  // Predicated region
  $region2: #{_lambda_.8} parent=0 // pred_check
    _
  $region3: #{_lambda_.8} parent=0 // pred_check_branch
    %9 = sbr.rel (0) target = $region5
  $region4: #{_lambda_.8} parent=0 // pred_region
    _
  $region5: #{_lambda_.8} parent=0 // pred_fallthru
    _
  // Predicated region
  $region6: #{_lambda_.8} parent=0 // pred_check
    _
  $region7: #{_lambda_.8} parent=0 // pred_check_branch
    %11 = sbr.rel (0) target = $region9
  $region8: #{_lambda_.8} parent=0 // pred_region
    _
  $region9: #{_lambda_.8} parent=0 // pred_fallthru
    _
  // Predicated region
  $region10: #{_lambda_.8} parent=0 // pred_check
    _
  $region11: #{_lambda_.8} parent=0 // pred_check_branch
    %13 = sbr.rel (0) target = $region13
  $region12: #{_lambda_.8} parent=0 // pred_region
    _
  $region13: #{_lambda_.8} parent=0 // pred_fallthru
    _
  %v14 = vld [vmem:[%s0] sm:$0xf]
  %v15 = vld [vmem:[%s0 + $0x4] sm:$0xf]
  %v16 = vld [vmem:[%s0 + $0x8] sm:$0xf]
  %v17 = vld [vmem:[%s0 + $0xc] sm:$0xf]
  %v18 = vunpack.c.l.bf16 %v14
  %v19 = vunpack.c.l.bf16 %v15
  %v20 = vunpack.c.l.bf16 %v16
  %v21 = vunpack.c.l.bf16 %v17
  %v22 = vld [vmem:[%s1] sm:$0x1]
  %v24 = vlaneseq
  %v25 = vshrl.u32 %v24, 7
  %v26 = vsub.s32 0, %v25
  %v27 = vrot.slane %v22, %v26
  %v29 = vmul.f32 %v18, %v27
  %v30 = vmul.f32 %v19, %v27
  %v31 = vmul.f32 %v20, %v27
  %v32 = vmul.f32 %v21, %v27
  %v33 = vld [vmem:[%s2] sm:$0x1]
  %v35 = vlaneseq
  %v36 = vshrl.u32 %v35, 7
  %v37 = vsub.s32 0, %v36
  %v38 = vrot.slane %v33, %v37
  %v40 = vadd.f32 %v29, %v38
  %v41 = vadd.f32 %v30, %v38
  %v42 = vadd.f32 %v31, %v38
  %v43 = vadd.f32 %v32, %v38
  %v44 = vmax.f32 %v40, 0.0
  %v45 = vmax.f32 %v41, 0.0
  %v46 = vmax.f32 %v42, 0.0
  %v47 = vmax.f32 %v43, 0.0
  %v48 = vpack.c.bf16 %v45, %v44
  %v49 = vpack.c.bf16 %v47, %v46
  %v52 = vunpack.c.l.b16 %v48
  %v53 = vunpack.c.h.b16 %v48
  %v54 = vunpack.c.l.b16 %v49
  %v55 = vunpack.c.h.b16 %v49
  %v56 = vpack.c.b16 %v52, %v52
  %v57 = vpack.c.b16 %v53, %v53
  %v58 = vpack.c.b16 %v54, %v54
  %v59 = vpack.c.b16 %v55, %v55
  %64 = vst [vmem:[%s3] sm:$0xf] %v56
  %65 = vst [vmem:[%s3 + $0x4] sm:$0xf] %v57
  %66 = vst [vmem:[%s3 + $0x8] sm:$0xf] %v58
  %67 = vst [vmem:[%s3 + $0xc] sm:$0xf] %v59
  // Predicated region
  $region14: #{_lambda_.8} parent=0 // pred_check
    _
  $region15: #{_lambda_.8} parent=0 // pred_check_branch
    %69 = sbr.rel (0) target = $region17
  $region16: #{_lambda_.8} parent=0 // pred_region
    _
  $region17: #{_lambda_.8} parent=0 // pred_fallthru
    _
  // Predicated region
  $region18: #{_lambda_.8} parent=0 // pred_check
    _
  $region19: #{_lambda_.8} parent=0 // pred_check_branch
    %71 = sbr.rel (0) target = $region21
  $region20: #{_lambda_.8} parent=0 // pred_region
    _
  $region21: #{_lambda_.8} parent=0 // pred_fallthru
    _

// kernel: _lambda_.7
$region0: #{_lambda_.7}
  #allocation0 [shape = 'u32[]', space=smem, size = 0x4, offset = 0x4, fixed_abs, tag = 'smem constant byte address 0x4 - core index']
  #allocation1 [shape = 'u32[144,128]{1,0:T(1,128)}', space=vmem, size = 0x12000, scoped, tag = 'internal scratch']
  %s0 = inlined_call_operand.vmem [shape: bf16[32,144], index: 0, kind: input, shape index: {}]
  %s1 = inlined_call_operand.vmem [shape: bf16[144,128], index: 1, kind: input, shape index: {}]
  %s2 = inlined_call_operand.vmem [shape: bf16[32,128], index: 2, kind: output, shape index: {0}]
  %s3 = inlined_call_operand.vmem [shape: f32[1,2,128], index: 3, kind: output, shape index: {1}]
  %4 = xla_tuple %s2, %s3
  %s5 = sld [smem:[#allocation0]]
  $region26: #{_lambda_.7} parent=0
    _
  %s7 = ssub.s32 1, %s5
  %s8 = scalar_select 0, %s7, %s5
  // Predicated region
  $region2: #{_lambda_.7} parent=0 // pred_check
    _
  $region3: #{_lambda_.7} parent=0 // pred_check_branch
    %10 = sbr.rel (0) target = $region5
  $region4: #{_lambda_.7} parent=0 // pred_region
    _
  $region5: #{_lambda_.7} parent=0 // pred_fallthru
    _
  // Predicated region
  $region6: #{_lambda_.7} parent=0 // pred_check
    _
  $region7: #{_lambda_.7} parent=0 // pred_check_branch
    %12 = sbr.rel (0) target = $region9
  $region8: #{_lambda_.7} parent=0 // pred_region
    _
  $region9: #{_lambda_.7} parent=0 // pred_fallthru
    _
  %v14 = vld [vmem:[%s0] sm:$0xff]
  %v15 = vld [vmem:[%s0 + $0x8] sm:$0xff]
  %v16 = vld [vmem:[%s0 + $0x10] sm:$0xff]
  %v17 = vld [vmem:[%s0 + $0x18] sm:$0xff]
  %v18 = vld [vmem:[%s1] sm:$0xf]
  %v19 = vld [vmem:[%s1 + $0x4] sm:$0xf]
  %v20 = vld [vmem:[%s1 + $0x8] sm:$0xf]
  %v21 = vld [vmem:[%s1 + $0xc] sm:$0xf]
  %v22 = vld [vmem:[%s1 + $0x10] sm:$0xf]
  %v23 = vld [vmem:[%s1 + $0x14] sm:$0xf]
  %v24 = vld [vmem:[%s1 + $0x18] sm:$0xf]
  %v25 = vld [vmem:[%s1 + $0x1c] sm:$0xf]
  %v26 = vld [vmem:[%s1 + $0x20] sm:$0xf]
  %v27 = vld [vmem:[%s1 + $0x24] sm:$0xf]
  %v28 = vld [vmem:[%s1 + $0x28] sm:$0xf]
  %v29 = vld [vmem:[%s1 + $0x2c] sm:$0xf]
  %v30 = vld [vmem:[%s1 + $0x30] sm:$0xf]
  %v31 = vld [vmem:[%s1 + $0x34] sm:$0xf]
  %v32 = vld [vmem:[%s1 + $0x38] sm:$0xf]
  %v33 = vld [vmem:[%s1 + $0x3c] sm:$0xf]
  %v34 = vld [vmem:[%s1 + $0x40] sm:$0xf]
  %v35 = vld [vmem:[%s1 + $0x44] sm:$0xf]
  %v40 = vunpack.c.l.b16 %v14
  %v41 = vunpack.c.h.b16 %v14
  %v42 = vunpack.c.l.b16 %v15
  %v43 = vunpack.c.h.b16 %v15
  %v44 = vunpack.c.l.b16 %v16
  %v45 = vunpack.c.h.b16 %v16
  %v46 = vunpack.c.l.b16 %v17
  %v47 = vunpack.c.h.b16 %v17
  %v48 = vpack.c.b16 %v42, %v40
  %v49 = vpack.c.b16 %v43, %v41
  %v50 = vpack.c.b16 %v46, %v44
  %v51 = vpack.c.b16 %v47, %v45
  %v72 = vunpack.c.l.b16 %v18
  %v73 = vunpack.c.l.b16 %v19
  %v74 = vunpack.c.l.b16 %v20
  %v75 = vunpack.c.l.b16 %v21
  %v76 = vunpack.c.l.b16 %v22
  %v77 = vunpack.c.l.b16 %v23
  %v78 = vunpack.c.l.b16 %v24
  %v79 = vunpack.c.l.b16 %v25
  %v80 = vunpack.c.l.b16 %v26
  %v81 = vunpack.c.l.b16 %v27
  %v82 = vunpack.c.l.b16 %v28
  %v83 = vunpack.c.l.b16 %v29
  %v84 = vunpack.c.l.b16 %v30
  %v85 = vunpack.c.l.b16 %v31
  %v86 = vunpack.c.l.b16 %v32
  %v87 = vunpack.c.l.b16 %v33
  %v88 = vunpack.c.l.b16 %v34
  %v89 = vunpack.c.l.b16 %v35
  %v90 = vpack.c.b16 %v73, %v72
  %v91 = vpack.c.b16 %v75, %v74
  %v92 = vpack.c.b16 %v77, %v76
  %v93 = vpack.c.b16 %v79, %v78
  %v94 = vpack.c.b16 %v81, %v80
  %v95 = vpack.c.b16 %v83, %v82
  %v96 = vpack.c.b16 %v85, %v84
  %v97 = vpack.c.b16 %v87, %v86
  %v98 = vpack.c.b16 %v89, %v88
  %vm108 = vcmask 130048
  %v110 = vsel %vm108, %v49, 0
  %v113 = vsel %vm108, %v51, 0
  %115 = vmatprep.subr.bf16.mxu0 0
  %116 = vmatpush1.bf16.msra.mxu0 %v90
  %117 = vmatprep.subr.bf16.mxu0 0
  %118 = vmatpush1.bf16.msra.mxu0 %v91
  %119 = vmatprep.subr.bf16.mxu0 0
  %120 = vmatpush1.bf16.msra.mxu0 %v92
  %121 = vmatprep.subr.bf16.mxu0 0
  %122 = vmatpush1.bf16.msra.mxu0 %v93
  %123 = vmatprep.subr.bf16.mxu0 0
  %124 = vmatpush1.bf16.msra.mxu0 %v94
  %125 = vmatprep.subr.bf16.mxu0 0
  %126 = vmatpush1.bf16.msra.mxu0 %v95
  %127 = vmatprep.subr.bf16.mxu0 0
  %128 = vmatpush1.bf16.msra.mxu0 %v96
  %129 = vmatprep.subr.bf16.mxu0 0
  %130 = vmatpush1.bf16.msra.mxu0 %v97
  %131 = vmatprep.subr.bf16.mxu0 0
  %132 = vmatpush1.bf16.msra.mxu0 %v98
  %133 = vmatprep.subr.bf16.mxu0 0
  %134 = vmatpush1.bf16.msra.mxu0 0
  %135 = vmatprep.subr.bf16.mxu0 0
  %136 = vmatpush1.bf16.msra.mxu0 0
  %137 = vmatprep.subr.bf16.mxu0 0
  %138 = vmatpush1.bf16.msra.mxu0 0
  %139 = vmatprep.subr.bf16.mxu0 0
  %140 = vmatpush1.bf16.msra.mxu0 0
  %141 = vmatprep.subr.bf16.mxu0 0
  %142 = vmatpush1.bf16.msra.mxu0 0
  %143 = vmatprep.subr.bf16.mxu0 0
  %144 = vmatpush1.bf16.msra.mxu0 0
  %145 = vmatprep.subr.bf16.mxu0 0
  %146 = vmatpush1.bf16.msra.mxu0 0
  %147 = vmatprep.mubr.bf16.mxu0 %v110
  %148 = vmatmul.mubr.bf16.gmra.mrb[0].mxu0 %v48
  %v149 = vpop.f32.mrb[0].mxu0
  %v150 = vadd.f32 0.0, %v149
  %v151 = vpop.f32.mrb[0].mxu0
  %v152 = vpop.f32.mrb[0].mxu0
  %v153 = vadd.f32 0.0, %v152
  %v154 = vpop.f32.mrb[0].mxu0
  %155 = vmatprep.mubr.bf16.mxu0 %v113
  %156 = vmatmul.mubr.bf16.gmra.mrb[0].mxu0 %v50
  %v157 = vpop.f32.mrb[0].mxu0
  %v158 = vadd.f32 0.0, %v157
  %v159 = vpop.f32.mrb[0].mxu0
  %v160 = vpop.f32.mrb[0].mxu0
  %v161 = vadd.f32 0.0, %v160
  %v162 = vpop.f32.mrb[0].mxu0
  %163 = vdwg.mxu0
  %v164 = vpack.c.bf16 %v153, %v150
  %v165 = vpack.c.bf16 %v161, %v158
  %v168 = vunpack.c.l.b16 %v164
  %v169 = vunpack.c.h.b16 %v164
  %v170 = vunpack.c.l.b16 %v165
  %v171 = vunpack.c.h.b16 %v165
  %v172 = vpack.c.b16 %v168, %v168
  %v173 = vpack.c.b16 %v169, %v169
  %v174 = vpack.c.b16 %v170, %v170
  %v175 = vpack.c.b16 %v171, %v171
  %180 = vst [vmem:[%s2] sm:$0xf] %v172
  %181 = vst [vmem:[%s2 + $0x4] sm:$0xf] %v173
  %182 = vst [vmem:[%s2 + $0x8] sm:$0xf] %v174
  %183 = vst [vmem:[%s2 + $0xc] sm:$0xf] %v175
  %v184 = vadd.f32 %v150, %v153
  %v185 = vadd.f32 %v184, %v158
  %v186 = vadd.f32 %v185, %v161
  %v187 = vrot.slane %v186, 4
  %v188 = vadd.f32 %v186, %v187
  %v189 = vrot.slane %v188, 2
  %v190 = vadd.f32 %v188, %v189
  %v191 = vrot.slane %v190, 1
  %v192 = vadd.f32 %v190, %v191
  %193 = vst [vmem:[%s3] sm:$0x1] %v192
  %v194 = vmul.f32 %v150, %v150
  %v195 = vmul.f32 %v153, %v153
  %v196 = vmul.f32 %v158, %v158
  %v197 = vmul.f32 %v161, %v161
  %v198 = vadd.f32 %v194, %v195
  %v199 = vadd.f32 %v198, %v196
  %v200 = vadd.f32 %v199, %v197
  %v201 = vrot.slane %v200, 4
  %v202 = vadd.f32 %v200, %v201
  %v203 = vrot.slane %v202, 2
  %v204 = vadd.f32 %v202, %v203
  %v205 = vrot.slane %v204, 1
  %v206 = vadd.f32 %v204, %v205
  %207 = vst [vmem:[%s3 + $0x1] sm:$0x1] %v206
  // Predicated region
  $region10: #{_lambda_.7} parent=0 // pred_check
    _
  $region11: #{_lambda_.7} parent=0 // pred_check_branch
    %209 = sbr.rel (0) target = $region13
  $region12: #{_lambda_.7} parent=0 // pred_region
    _
  $region13: #{_lambda_.7} parent=0 // pred_fallthru
    _
  // Predicated region
  $region14: #{_lambda_.7} parent=0 // pred_check
    _
  $region15: #{_lambda_.7} parent=0 // pred_check_branch
    %211 = sbr.rel (0) target = $region17
  $region16: #{_lambda_.7} parent=0 // pred_region
    _
  $region17: #{_lambda_.7} parent=0 // pred_fallthru
    _
  // Predicated region
  $region18: #{_lambda_.7} parent=0 // pred_check
    _
  $region19: #{_lambda_.7} parent=0 // pred_check_branch
    %213 = sbr.rel (0) target = $region21
  $region20: #{_lambda_.7} parent=0 // pred_region
    _
  $region21: #{_lambda_.7} parent=0 // pred_fallthru
    _
  // Predicated region
  $region22: #{_lambda_.7} parent=0 // pred_check
    _
  $region23: #{_lambda_.7} parent=0 // pred_check_branch
    %215 = sbr.rel (0) target = $region25
  $region24: #{_lambda_.7} parent=0 // pred_region
    _
  $region25: #{_lambda_.7} parent=0 // pred_fallthru
    _

// kernel: _lambda_.9
$region0: #{_lambda_.9}
  #allocation0 [shape = 'u32[]', space=smem, size = 0x4, offset = 0x4, fixed_abs, tag = 'smem constant byte address 0x4 - core index']
  #allocation1 [shape = 'u32[144,128]{1,0:T(1,128)}', space=vmem, size = 0x12000, scoped, tag = 'internal scratch']
  %s0 = inlined_call_operand.vmem [shape: bf16[128,72], index: 0, kind: input, shape index: {}]
  %s1 = inlined_call_operand.vmem [shape: bf16[72,128], index: 1, kind: input, shape index: {}]
  %s2 = inlined_call_operand.vmem [shape: f32[128,128], index: 2, kind: output, shape index: {}]
  %s3 = sld [smem:[#allocation0]]
  $region18: #{_lambda_.9} parent=0
    _
  %s5 = ssub.s32 1, %s3
  %s6 = scalar_select 0, %s5, %s3
  // Predicated region
  $region2: #{_lambda_.9} parent=0 // pred_check
    _
  $region3: #{_lambda_.9} parent=0 // pred_check_branch
    %8 = sbr.rel (0) target = $region5
  $region4: #{_lambda_.9} parent=0 // pred_region
    _
  $region5: #{_lambda_.9} parent=0 // pred_fallthru
    _
  // Predicated region
  $region6: #{_lambda_.9} parent=0 // pred_check
    _
  $region7: #{_lambda_.9} parent=0 // pred_check_branch
    %10 = sbr.rel (0) target = $region9
  $region8: #{_lambda_.9} parent=0 // pred_region
    _
  $region9: #{_lambda_.9} parent=0 // pred_fallthru
    _
  %v12 = vld [vmem:[%s0] sm:$0xf]
  %v13 = vld [vmem:[%s0 + $0x4] sm:$0xf]
  %v14 = vld [vmem:[%s0 + $0x8] sm:$0xf]
  %v15 = vld [vmem:[%s0 + $0xc] sm:$0xf]
  %v16 = vld [vmem:[%s0 + $0x10] sm:$0xf]
  %v17 = vld [vmem:[%s0 + $0x14] sm:$0xf]
  %v18 = vld [vmem:[%s0 + $0x18] sm:$0xf]
  %v19 = vld [vmem:[%s0 + $0x1c] sm:$0xf]
  %v20 = vld [vmem:[%s0 + $0x20] sm:$0xf]
  %v21 = vld [vmem:[%s0 + $0x24] sm:$0xf]
  %v22 = vld [vmem:[%s0 + $0x28] sm:$0xf]
  %v23 = vld [vmem:[%s0 + $0x2c] sm:$0xf]
  %v24 = vld [vmem:[%s0 + $0x30] sm:$0xf]
  %v25 = vld [vmem:[%s0 + $0x34] sm:$0xf]
  %v26 = vld [vmem:[%s0 + $0x38] sm:$0xf]
  %v27 = vld [vmem:[%s0 + $0x3c] sm:$0xf]
  %v28 = vld [vmem:[%s1] sm:$0xf]
  %v29 = vld [vmem:[%s1 + $0x4] sm:$0xf]
  %v30 = vld [vmem:[%s1 + $0x8] sm:$0xf]
  %v31 = vld [vmem:[%s1 + $0xc] sm:$0xf]
  %v32 = vld [vmem:[%s1 + $0x10] sm:$0xf]
  %v33 = vld [vmem:[%s1 + $0x14] sm:$0xf]
  %v34 = vld [vmem:[%s1 + $0x18] sm:$0xf]
  %v35 = vld [vmem:[%s1 + $0x1c] sm:$0xf]
  %v36 = vld [vmem:[%s1 + $0x20] sm:$0xf]
  %v53 = vunpack.c.l.b16 %v12
  %v54 = vunpack.c.l.b16 %v13
  %v55 = vunpack.c.l.b16 %v14
  %v56 = vunpack.c.l.b16 %v15
  %v57 = vunpack.c.l.b16 %v16
  %v58 = vunpack.c.l.b16 %v17
  %v59 = vunpack.c.l.b16 %v18
  %v60 = vunpack.c.l.b16 %v19
  %v61 = vunpack.c.l.b16 %v20
  %v62 = vunpack.c.l.b16 %v21
  %v63 = vunpack.c.l.b16 %v22
  %v64 = vunpack.c.l.b16 %v23
  %v65 = vunpack.c.l.b16 %v24
  %v66 = vunpack.c.l.b16 %v25
  %v67 = vunpack.c.l.b16 %v26
  %v68 = vunpack.c.l.b16 %v27
  %v69 = vpack.c.b16 %v54, %v53
  %v70 = vpack.c.b16 %v56, %v55
  %v71 = vpack.c.b16 %v58, %v57
  %v72 = vpack.c.b16 %v60, %v59
  %v73 = vpack.c.b16 %v62, %v61
  %v74 = vpack.c.b16 %v64, %v63
  %v75 = vpack.c.b16 %v66, %v65
  %v76 = vpack.c.b16 %v68, %v67
  %v86 = vunpack.c.l.b16 %v28
  %v87 = vunpack.c.l.b16 %v29
  %v88 = vunpack.c.l.b16 %v30
  %v89 = vunpack.c.l.b16 %v31
  %v90 = vunpack.c.l.b16 %v32
  %v91 = vunpack.c.l.b16 %v33
  %v92 = vunpack.c.l.b16 %v34
  %v93 = vunpack.c.l.b16 %v35
  %v94 = vunpack.c.l.b16 %v36
  %v95 = vpack.c.b16 %v87, %v86
  %v96 = vpack.c.b16 %v89, %v88
  %v97 = vpack.c.b16 %v91, %v90
  %v98 = vpack.c.b16 %v93, %v92
  %v99 = vpack.c.b16 %v94, %v94
  %vm104 = vcmask 588800
  %v106 = vsel %vm104, %v69, 0
  %v109 = vsel %vm104, %v70, 0
  %v112 = vsel %vm104, %v71, 0
  %v115 = vsel %vm104, %v72, 0
  %v118 = vsel %vm104, %v73, 0
  %v121 = vsel %vm104, %v74, 0
  %v124 = vsel %vm104, %v75, 0
  %v127 = vsel %vm104, %v76, 0
  %vm129 = vcmask 1043456
  %v131 = vsel %vm129, %v99, 0
  %133 = vmatprep.subr.bf16.mxu0 0
  %134 = vmatpush1.bf16.msra.mxu0 %v95
  %135 = vmatprep.subr.bf16.mxu0 0
  %136 = vmatpush1.bf16.msra.mxu0 %v96
  %137 = vmatprep.subr.bf16.mxu0 0
  %138 = vmatpush1.bf16.msra.mxu0 %v97
  %139 = vmatprep.subr.bf16.mxu0 0
  %140 = vmatpush1.bf16.msra.mxu0 %v98
  %141 = vmatprep.subr.bf16.mxu0 0
  %142 = vmatpush1.bf16.msra.mxu0 %v131
  %143 = vmatprep.subr.bf16.mxu0 0
  %144 = vmatpush1.bf16.msra.mxu0 0
  %145 = vmatprep.subr.bf16.mxu0 0
  %146 = vmatpush1.bf16.msra.mxu0 0
  %147 = vmatprep.subr.bf16.mxu0 0
  %148 = vmatpush1.bf16.msra.mxu0 0
  %149 = vmatprep.subr.bf16.mxu0 0
  %150 = vmatpush1.bf16.msra.mxu0 0
  %151 = vmatprep.subr.bf16.mxu0 0
  %152 = vmatpush1.bf16.msra.mxu0 0
  %153 = vmatprep.subr.bf16.mxu0 0
  %154 = vmatpush1.bf16.msra.mxu0 0
  %155 = vmatprep.subr.bf16.mxu0 0
  %156 = vmatpush1.bf16.msra.mxu0 0
  %157 = vmatprep.subr.bf16.mxu0 0
  %158 = vmatpush1.bf16.msra.mxu0 0
  %159 = vmatprep.subr.bf16.mxu0 0
  %160 = vmatpush1.bf16.msra.mxu0 0
  %161 = vmatprep.subr.bf16.mxu0 0
  %162 = vmatpush1.bf16.msra.mxu0 0
  %163 = vmatprep.subr.bf16.mxu0 0
  %164 = vmatpush1.bf16.msra.mxu0 0
  %165 = vmatprep.mubr.bf16.mxu0 0
  %166 = vmatmul.mubr.bf16.gmra.mrb[0].mxu0 %v106
  %v167 = vpop.f32.mrb[0].mxu0
  %v168 = vadd.f32 0.0, %v167
  %v169 = vpop.f32.mrb[0].mxu0
  %v170 = vpop.f32.mrb[0].mxu0
  %v171 = vadd.f32 0.0, %v170
  %v172 = vpop.f32.mrb[0].mxu0
  %173 = vmatprep.mubr.bf16.mxu0 0
  %174 = vmatmul.mubr.bf16.gmra.mrb[0].mxu0 %v109
  %v175 = vpop.f32.mrb[0].mxu0
  %v176 = vadd.f32 0.0, %v175
  %v177 = vpop.f32.mrb[0].mxu0
  %v178 = vpop.f32.mrb[0].mxu0
  %v179 = vadd.f32 0.0, %v178
  %v180 = vpop.f32.mrb[0].mxu0
  %181 = vmatprep.mubr.bf16.mxu0 0
  %182 = vmatmul.mubr.bf16.gmra.mrb[0].mxu0 %v112
  %v183 = vpop.f32.mrb[0].mxu0
  %v184 = vadd.f32 0.0, %v183
  %v185 = vpop.f32.mrb[0].mxu0
  %v186 = vpop.f32.mrb[0].mxu0
  %v187 = vadd.f32 0.0, %v186
  %v188 = vpop.f32.mrb[0].mxu0
  %189 = vmatprep.mubr.bf16.mxu0 0
  %190 = vmatmul.mubr.bf16.gmra.mrb[0].mxu0 %v115
  %v191 = vpop.f32.mrb[0].mxu0
  %v192 = vadd.f32 0.0, %v191
  %v193 = vpop.f32.mrb[0].mxu0
  %v194 = vpop.f32.mrb[0].mxu0
  %v195 = vadd.f32 0.0, %v194
  %v196 = vpop.f32.mrb[0].mxu0
  %197 = vmatprep.mubr.bf16.mxu0 0
  %198 = vmatmul.mubr.bf16.gmra.mrb[0].mxu0 %v118
  %v199 = vpop.f32.mrb[0].mxu0
  %v200 = vadd.f32 0.0, %v199
  %v201 = vpop.f32.mrb[0].mxu0
  %v202 = vpop.f32.mrb[0].mxu0
  %v203 = vadd.f32 0.0, %v202
  %v204 = vpop.f32.mrb[0].mxu0
  %205 = vmatprep.mubr.bf16.mxu0 0
  %206 = vmatmul.mubr.bf16.gmra.mrb[0].mxu0 %v121
  %v207 = vpop.f32.mrb[0].mxu0
  %v208 = vadd.f32 0.0, %v207
  %v209 = vpop.f32.mrb[0].mxu0
  %v210 = vpop.f32.mrb[0].mxu0
  %v211 = vadd.f32 0.0, %v210
  %v212 = vpop.f32.mrb[0].mxu0
  %213 = vmatprep.mubr.bf16.mxu0 0
  %214 = vmatmul.mubr.bf16.gmra.mrb[0].mxu0 %v124
  %v215 = vpop.f32.mrb[0].mxu0
  %v216 = vadd.f32 0.0, %v215
  %v217 = vpop.f32.mrb[0].mxu0
  %v218 = vpop.f32.mrb[0].mxu0
  %v219 = vadd.f32 0.0, %v218
  %v220 = vpop.f32.mrb[0].mxu0
  %221 = vmatprep.mubr.bf16.mxu0 0
  %222 = vmatmul.mubr.bf16.gmra.mrb[0].mxu0 %v127
  %v223 = vpop.f32.mrb[0].mxu0
  %v224 = vadd.f32 0.0, %v223
  %v225 = vpop.f32.mrb[0].mxu0
  %v226 = vpop.f32.mrb[0].mxu0
  %v227 = vadd.f32 0.0, %v226
  %v228 = vpop.f32.mrb[0].mxu0
  %229 = vdwg.mxu0
  %v230 = vmax.f32 %v168, -1.0
  %v231 = vmax.f32 %v171, -1.0
  %v232 = vmax.f32 %v176, -1.0
  %v233 = vmax.f32 %v179, -1.0
  %v234 = vmax.f32 %v184, -1.0
  %v235 = vmax.f32 %v187, -1.0
  %v236 = vmax.f32 %v192, -1.0
  %v237 = vmax.f32 %v195, -1.0
  %v238 = vmax.f32 %v200, -1.0
  %v239 = vmax.f32 %v203, -1.0
  %v240 = vmax.f32 %v208, -1.0
  %v241 = vmax.f32 %v211, -1.0
  %v242 = vmax.f32 %v216, -1.0
  %v243 = vmax.f32 %v219, -1.0
  %v244 = vmax.f32 %v224, -1.0
  %v245 = vmax.f32 %v227, -1.0
  %v246 = vmin.f32 %v230, 1.0
  %v247 = vmin.f32 %v231, 1.0
  %v248 = vmin.f32 %v232, 1.0
  %v249 = vmin.f32 %v233, 1.0
  %v250 = vmin.f32 %v234, 1.0
  %v251 = vmin.f32 %v235, 1.0
  %v252 = vmin.f32 %v236, 1.0
  %v253 = vmin.f32 %v237, 1.0
  %v254 = vmin.f32 %v238, 1.0
  %v255 = vmin.f32 %v239, 1.0
  %v256 = vmin.f32 %v240, 1.0
  %v257 = vmin.f32 %v241, 1.0
  %v258 = vmin.f32 %v242, 1.0
  %v259 = vmin.f32 %v243, 1.0
  %v260 = vmin.f32 %v244, 1.0
  %v261 = vmin.f32 %v245, 1.0
  %262 = vst [vmem:[%s2] sm:$0xff] %v246
  %263 = vst [vmem:[%s2 + $0x8] sm:$0xff] %v247
  %264 = vst [vmem:[%s2 + $0x10] sm:$0xff] %v248
  %265 = vst [vmem:[%s2 + $0x18] sm:$0xff] %v249
  %266 = vst [vmem:[%s2 + $0x20] sm:$0xff] %v250
  %267 = vst [vmem:[%s2 + $0x28] sm:$0xff] %v251
  %268 = vst [vmem:[%s2 + $0x30] sm:$0xff] %v252
  %269 = vst [vmem:[%s2 + $0x38] sm:$0xff] %v253
  %270 = vst [vmem:[%s2 + $0x40] sm:$0xff] %v254
  %271 = vst [vmem:[%s2 + $0x48] sm:$0xff] %v255
  %272 = vst [vmem:[%s2 + $0x50] sm:$0xff] %v256
  %273 = vst [vmem:[%s2 + $0x58] sm:$0xff] %v257
  %274 = vst [vmem:[%s2 + $0x60] sm:$0xff] %v258
  %275 = vst [vmem:[%s2 + $0x68] sm:$0xff] %v259
  %276 = vst [vmem:[%s2 + $0x70] sm:$0xff] %v260
  %277 = vst [vmem:[%s2 + $0x78] sm:$0xff] %v261
  // Predicated region
  $region10: #{_lambda_.9} parent=0 // pred_check
    _
  $region11: #{_lambda_.9} parent=0 // pred_check_branch
    %279 = sbr.rel (0) target = $region13
  $region12: #{_lambda_.9} parent=0 // pred_region
    _
  $region13: #{_lambda_.9} parent=0 // pred_fallthru
    _
  // Predicated region
  $region14: #{_lambda_.9} parent=0 // pred_check
    _
  $region15: #{_lambda_.9} parent=0 // pred_check_branch
    %281 = sbr.rel (0) target = $region17
  $region16: #{_lambda_.9} parent=0 // pred_region
    _
  $region17: #{_lambda_.9} parent=0 // pred_fallthru
    _

</llo_original>
